<compile_context>
chip_gen: v7x
topology: tpu7x:2x2x1
jax: 0.10.0
libtpu: 0.0.40
codegen_flags: <defaults>
</compile_context>

<pallas_src>
import jax
import jax.numpy as jnp
import numpy as np
from jax.experimental import pallas as pl
from jax.experimental.pallas import tpu as pltpu

S_FIXED = 3      # forced by LayerNorm(normalized_shape=[3, 1]) in the module
LN_EPS = 1e-5    # torch.nn.LayerNorm default eps


def _ln_bias_softmax3(x0, x1, x2, w_row, b_row):
    """LayerNorm over the 3 S-values, *weight + (LN bias + agent bias), softmax.

    x0/x1/x2: (TB, 1) f32 columns (one per S).  w_row/b_row: (1, 3) f32.
    Everything is elementwise over the batch tile (pure VPU, no XLU reductions).
    """
    third = 1.0 / 3.0
    mu = (x0 + x1 + x2) * third
    d0, d1, d2 = x0 - mu, x1 - mu, x2 - mu
    var = (d0 * d0 + d1 * d1 + d2 * d2) * third
    r = jax.lax.rsqrt(var + LN_EPS)
    z0 = d0 * r * w_row[:, 0:1] + b_row[:, 0:1]
    z1 = d1 * r * w_row[:, 1:2] + b_row[:, 1:2]
    z2 = d2 * r * w_row[:, 2:3] + b_row[:, 2:3]
    zm = jnp.maximum(jnp.maximum(z0, z1), z2)
    e0, e1, e2 = jnp.exp(z0 - zm), jnp.exp(z1 - zm), jnp.exp(z2 - zm)
    inv = 1.0 / (e0 + e1 + e2)
    return e0 * inv, e1 * inv, e2 * inv


def _make_mmtas_kernel(seq: int, hidden: int, mm_precision):
    assert seq == S_FIXED
    D = hidden

    def kernel(q_ref, k_ref, v_ref, wg_ref, wvm_ref, prm_ref, o_ref):
        # per-S activation tiles of the current (m, batch-tile): all (TB, D),
        # second-minor 8-aligned (TB % 8 == 0 or TB == B), minor = full D.
        q0, q1, q2 = q_ref[0, 0], q_ref[0, 1], q_ref[0, 2]     # f32 (residual path)
        k0, k1, k2 = k_ref[0, 0], k_ref[0, 1], k_ref[0, 2]     # compute dtype
        v0, v1, v2 = v_ref[0, 0], v_ref[0, 1], v_ref[0, 2]     # compute dtype

        wg = wg_ref[0]          # (D, 2D)  [Gq | Gqk], compute dtype
        wvm = wvm_ref[0]        # (D, D)   head-mean of Wv, compute dtype
        prm = prm_ref[0]        # (4, 3)   [lnq_w; lnq_b+b2; lnk_w; lnk_b+b1] f32
        cdt = wg.dtype

        # raw-q mean over the 3 S rows (A = q̄ @ Wq is folded into the Gram weights)
        qbar = (q0 + q1 + q2) * (1.0 / 3.0)                    # (TB, D) f32

        # one fused MXU pass:  t = q̄ @ [Gq | Gqk]  -> (TB, 2D), f32 accumulate
        t = jnp.dot(qbar.astype(cdt), wg,
                    preferred_element_type=jnp.float32, precision=mm_precision)
        t_q = t[:, :D]
        t_k = t[:, D:]

        # agent scores = per-entry dot products, vectorized over the whole tile
        qs0 = jnp.sum(q0 * t_q, axis=1, keepdims=True)          # (TB, 1)
        qs1 = jnp.sum(q1 * t_q, axis=1, keepdims=True)
        qs2 = jnp.sum(q2 * t_q, axis=1, keepdims=True)
        ks0 = jnp.sum(k0 * t_k, axis=1, keepdims=True)          # bf16*f32 -> f32
        ks1 = jnp.sum(k1 * t_k, axis=1, keepdims=True)
        ks2 = jnp.sum(k2 * t_k, axis=1, keepdims=True)

        # q_agent = softmax_s( LN_[3,1](q_scores) + b2 )  (bias pre-merged)
        qa0, qa1, qa2 = _ln_bias_softmax3(qs0, qs1, qs2, prm[0:1, :], prm[1:2, :])
        # k_agent = softmax_s( LN_[1,3](k_scores) + b1 )
        ka0, ka1, ka2 = _ln_bias_softmax3(ks0, ks1, ks2, prm[2:3, :], prm[3:4, :])

        # rank-1 combine with the head-mean folded into Wvm:
        #   hm = (Σ_s ka_s * v_s) @ mean_h(Wv)               -> (TB, D)
        vw = ka0 * v0 + ka1 * v1 + ka2 * v2                     # (TB, D) f32
        hm = jnp.dot(vw.astype(cdt), wvm,
                     preferred_element_type=jnp.float32, precision=mm_precision)

        # out_s = qa_s (x) hm + residual -- three full-tile stores per grid step
        o_ref[0, 0] = (qa0 * hm + q0).astype(o_ref.dtype)
        o_ref[0, 1] = (qa1 * hm + q1).astype(o_ref.dtype)
        o_ref[0, 2] = (qa2 * hm + q2).astype(o_ref.dtype)

    return kernel


def _default_batch_tile(B: int) -> int:
    # Big tiles amortize the ~0.35 us per-grid-step overhead; cap them so the
    # activation blocks stay small on v7x's 64 MiB VMEM.  (For v7x with M == 1,
    # pass batch_tile <= B // 2 explicitly so both TensorCores get grid work.)
    if B <= 1024:
        return B
    for cand in range(1024, 7, -8):          # largest multiple-of-8 divisor <= 1024
        if B % cand == 0:
            return cand
    return B


def mmtas_forward(q, k, v, params, heads, *, batch_tile=None,
                  compute_dtype=jnp.bfloat16):
    B, M, S, D = q.shape
    assert S == S_FIXED, "MMTAs requires S == 3 (LayerNorm(normalized_shape=[3,1]))"

    TB = _default_batch_tile(B) if batch_tile is None else int(batch_tile)
    assert B % TB == 0, "batch_tile must divide the batch"
    assert TB == B or TB % 8 == 0, "partial batch tiles need TB % 8 == 0"
    n_bt = B // TB

    hi = jax.lax.Precision.HIGHEST
    f32_compute = jnp.dtype(compute_dtype) == jnp.dtype(jnp.float32)
    mm_prec = hi if f32_compute else None

    # ---- weight folding (pure XLA glue, algebraically exact) -----------------
    Wq, Wk, Wv = params["Wq"], params["Wk"], params["Wv"]
    gq = jnp.einsum('mde,mfe->mdf', Wq, Wq, precision=hi)          # Wq @ Wqᵀ  (M,D,D)
    gqk = jnp.einsum('mde,mfe->mdf', Wq, Wk, precision=hi)         # Wq @ Wkᵀ  (M,D,D)
    wg = jnp.concatenate([gq, gqk], axis=-1).astype(compute_dtype)  # (M, D, 2D)
    wvm = Wv.reshape(M, D, heads, D).mean(axis=2).astype(compute_dtype)  # (M, D, D)

    # merged tiny per-(m, s) params: rows = [lnq_w, lnq_b + b2, lnk_w, lnk_b + b1]
    lnq_w = params["lnq_w"][:, 0]
    lnq_b = params["lnq_b"][:, 0]
    lnk_w = params["lnk_w"][0, :]
    lnk_b = params["lnk_b"][0, :]
    prm = jnp.stack([
        jnp.broadcast_to(lnq_w[None, :], (M, S)),
        lnq_b[None, :] + params["b2"][:, :, 0],
        jnp.broadcast_to(lnk_w[None, :], (M, S)),
        lnk_b[None, :] + params["b1"][:, 0, :],
    ], axis=1).astype(jnp.float32)                                  # (M, 4, 3)

    # ---- S-major activation layout (pure XLA glue) ----------------------------
    # (M, S, B, D): per-m weight tiles are constant across the inner batch axis
    # (DMA'd once per m), and every in-kernel S-slice is a clean (TB, D) tile.
    qr = q.transpose(1, 2, 0, 3)                                    # f32 (residual)
    kr = k.transpose(1, 2, 0, 3).astype(compute_dtype)              # bf16 halves DMA bytes
    vr = v.transpose(1, 2, 0, 3).astype(compute_dtype)

    act_map = lambda m, bt: (m, 0, bt, 0)     # activations / output per (m, batch-tile)
    m_map = lambda m, bt: (m, 0, 0)           # weights / params constant across batch

    out = pl.pallas_call(
        _make_mmtas_kernel(S, D, mm_prec),
        out_shape=jax.ShapeDtypeStruct((M, S, B, D), q.dtype),
        grid_spec=pltpu.PrefetchScalarGridSpec(
            num_scalar_prefetch=0,
            # m outermost: weights stay VMEM-resident across the inner batch axis;
            # both axes write disjoint outputs -> "parallel" (v7x megacore sharding).
            grid=(M, n_bt),
            in_specs=[
                pl.BlockSpec((1, S, TB, D), act_map),   # q  (f32, residual)
                pl.BlockSpec((1, S, TB, D), act_map),   # k  (compute dtype)
                pl.BlockSpec((1, S, TB, D), act_map),   # v  (compute dtype)
                pl.BlockSpec((1, D, 2 * D), m_map),     # [Gq | Gqk]
                pl.BlockSpec((1, D, D), m_map),         # head-mean Wv
                pl.BlockSpec((1, 4, S), m_map),         # merged LN / bias params
            ],
            out_specs=pl.BlockSpec((1, S, TB, D), act_map),
        ),
        compiler_params=pltpu.CompilerParams(
            dimension_semantics=("parallel", "parallel")),
    )(qr, kr, vr, wg, wvm, prm)

    return out.transpose(2, 0, 1, 3)                                # (B, M, S, D)


def mmtas_reference(q, k, v, params, heads):
    """Pure-JAX reference matching the PyTorch forward exactly."""
    B, M, S, D = q.shape
    hi = jax.lax.Precision.HIGHEST
    qp = jnp.einsum('bmsd,mde->bmse', q, params["Wq"], precision=hi)
    kp = jnp.einsum('bmsd,mde->bmse', k, params["Wk"], precision=hi)
    vp = jnp.einsum('bmsd,mde->bmse', v, params["Wv"], precision=hi)
    A = jnp.mean(qp, axis=-2, keepdims=True)                        # (B,M,1,HD)

    qa = jnp.matmul(qp, jnp.swapaxes(A, -1, -2), precision=hi)      # (B,M,3,1)
    mu = qa.mean(axis=(-2, -1), keepdims=True)
    var = ((qa - mu) ** 2).mean(axis=(-2, -1), keepdims=True)
    qa = (qa - mu) / jnp.sqrt(var + LN_EPS) * params["lnq_w"] + params["lnq_b"]
    qa = jax.nn.softmax(qa + params["b2"], axis=2)

    ka = jnp.matmul(A, jnp.swapaxes(kp, -1, -2), precision=hi)      # (B,M,1,3)
    mu = ka.mean(axis=(-2, -1), keepdims=True)
    var = ((ka - mu) ** 2).mean(axis=(-2, -1), keepdims=True)
    ka = (ka - mu) / jnp.sqrt(var + LN_EPS) * params["lnk_w"] + params["lnk_b"]
    ka = ka + params["b1"]
    ka = jax.nn.softmax(ka, axis=3)

    qkv = jnp.matmul(jnp.matmul(qa, ka, precision=hi), vp, precision=hi)
    qkv = qkv.reshape(B, M, S, heads, D).mean(-2) + q
    return qkv


if __name__ == "__main__":
    B, M, S, D, heads = 2, 4, 3, 32, 2     # S fixed at 3 by the module's LayerNorms
    HD = heads * D

    key = jax.random.PRNGKey(0)
    kq, kk, kv, kwq, kwk, kwv, kb1, kb2 = jax.random.split(key, 8)

    # deterministic synthetic parameters (torch.randn analogues, scaled for stability)
    params = {
        "Wq": 0.1 * jax.random.normal(kwq, (M, D, HD), jnp.float32),
        "Wk": 0.1 * jax.random.normal(kwk, (M, D, HD), jnp.float32),
        "Wv": 0.1 * jax.random.normal(kwv, (M, D, HD), jnp.float32),
        "lnq_w": jnp.ones((S, 1), jnp.float32),    # torch LayerNorm default init
        "lnq_b": jnp.zeros((S, 1), jnp.float32),
        "lnk_w": jnp.ones((1, S), jnp.float32),
        "lnk_b": jnp.zeros((1, S), jnp.float32),
        "b1": 0.1 * jax.random.normal(kb1, (M, 1, S), jnp.float32),
        "b2": 0.1 * jax.random.normal(kb2, (M, S, 1), jnp.float32),
    }
    # TODO(synk): torch.nn.Dropout is declared in __init__ but never applied in
    # forward(), so it is intentionally omitted here.

    q = 0.1 * jax.random.normal(kq, (B, M, S, D), jnp.float32)
    k = 0.1 * jax.random.normal(kk, (B, M, S, D), jnp.float32)
    v = 0.1 * jax.random.normal(kv, (B, M, S, D), jnp.float32)

    ref = mmtas_reference(q, k, v, params, heads)

    # default (performance) config: bf16 matmul operands + bf16 k/v DMA, f32 accumulation
    out_bf16 = jax.block_until_ready(mmtas_forward(q, k, v, params, heads))
    np.testing.assert_allclose(np.asarray(out_bf16), np.asarray(ref),
                               rtol=5e-2, atol=5e-3)

    # full-f32 config (MXU precision=HIGHEST): near-exact vs the reference
    out_f32 = jax.block_until_ready(
        mmtas_forward(q, k, v, params, heads, compute_dtype=jnp.float32))
    np.testing.assert_allclose(np.asarray(out_f32), np.asarray(ref),
                               rtol=1e-3, atol=1e-4)

    print("KERNEL_OK")
</pallas_src>

<mosaic_0001>
module attributes {stable_mosaic.version = 11 : i64} {
  func.func @kernel(%arg0: i32, %arg1: i32, %arg2: memref<1x3x2x32xf32, #tpu.memory_space<vmem>>, %arg3: memref<1x3x2x32xbf16, #tpu.memory_space<vmem>>, %arg4: memref<1x3x2x32xbf16, #tpu.memory_space<vmem>>, %arg5: memref<1x32x64xbf16, #tpu.memory_space<vmem>>, %arg6: memref<1x32x32xbf16, #tpu.memory_space<vmem>>, %arg7: memref<1x4x3xf32, #tpu.memory_space<vmem>>, %arg8: memref<1x3x2x32xf32, #tpu.memory_space<vmem>>) attributes {dimension_semantics = [#tpu.dimension_semantics<parallel>, #tpu.dimension_semantics<parallel>], iteration_bounds = array<i64: 4, 1>, scalar_prefetch = 0 : i64, scratch_operands = 0 : i64, tpu.core_type = #tpu.core_type<tc>, window_params = [{transform_indices = @transform_0, window_bounds = array<i64: 1, 3, 2, 32>}, {transform_indices = @transform_1, window_bounds = array<i64: 1, 3, 2, 32>}, {transform_indices = @transform_2, window_bounds = array<i64: 1, 3, 2, 32>}, {transform_indices = @transform_3, window_bounds = array<i64: 1, 32, 64>}, {transform_indices = @transform_4, window_bounds = array<i64: 1, 32, 32>}, {transform_indices = @transform_5, window_bounds = array<i64: 1, 4, 3>}, {transform_indices = @transform_6, window_bounds = array<i64: 1, 3, 2, 32>}]} {
    %c0 = arith.constant 0 : index
    %c0_0 = arith.constant 0 : index
    %c0_1 = arith.constant 0 : index
    %c0_2 = arith.constant 0 : index
    %0 = vector.load %arg2[%c0, %c0_0, %c0_1, %c0_2] : memref<1x3x2x32xf32, #tpu.memory_space<vmem>>, vector<1x1x2x32xf32>
    %1 = vector.shape_cast %0 : vector<1x1x2x32xf32> to vector<2x32xf32>
    %c0_3 = arith.constant 0 : index
    %c1 = arith.constant 1 : index
    %c0_4 = arith.constant 0 : index
    %c0_5 = arith.constant 0 : index
    %2 = vector.load %arg2[%c0_3, %c1, %c0_4, %c0_5] : memref<1x3x2x32xf32, #tpu.memory_space<vmem>>, vector<1x1x2x32xf32>
    %3 = vector.shape_cast %2 : vector<1x1x2x32xf32> to vector<2x32xf32>
    %c0_6 = arith.constant 0 : index
    %c2 = arith.constant 2 : index
    %c0_7 = arith.constant 0 : index
    %c0_8 = arith.constant 0 : index
    %4 = vector.load %arg2[%c0_6, %c2, %c0_7, %c0_8] : memref<1x3x2x32xf32, #tpu.memory_space<vmem>>, vector<1x1x2x32xf32>
    %5 = vector.shape_cast %4 : vector<1x1x2x32xf32> to vector<2x32xf32>
    %c0_9 = arith.constant 0 : index
    %c0_10 = arith.constant 0 : index
    %c0_11 = arith.constant 0 : index
    %c0_12 = arith.constant 0 : index
    %6 = vector.load %arg3[%c0_9, %c0_10, %c0_11, %c0_12] : memref<1x3x2x32xbf16, #tpu.memory_space<vmem>>, vector<1x1x2x32xbf16>
    %7 = vector.shape_cast %6 : vector<1x1x2x32xbf16> to vector<2x32xbf16>
    %c0_13 = arith.constant 0 : index
    %c1_14 = arith.constant 1 : index
    %c0_15 = arith.constant 0 : index
    %c0_16 = arith.constant 0 : index
    %8 = vector.load %arg3[%c0_13, %c1_14, %c0_15, %c0_16] : memref<1x3x2x32xbf16, #tpu.memory_space<vmem>>, vector<1x1x2x32xbf16>
    %9 = vector.shape_cast %8 : vector<1x1x2x32xbf16> to vector<2x32xbf16>
    %c0_17 = arith.constant 0 : index
    %c2_18 = arith.constant 2 : index
    %c0_19 = arith.constant 0 : index
    %c0_20 = arith.constant 0 : index
    %10 = vector.load %arg3[%c0_17, %c2_18, %c0_19, %c0_20] : memref<1x3x2x32xbf16, #tpu.memory_space<vmem>>, vector<1x1x2x32xbf16>
    %11 = vector.shape_cast %10 : vector<1x1x2x32xbf16> to vector<2x32xbf16>
    %c0_21 = arith.constant 0 : index
    %c0_22 = arith.constant 0 : index
    %c0_23 = arith.constant 0 : index
    %c0_24 = arith.constant 0 : index
    %12 = vector.load %arg4[%c0_21, %c0_22, %c0_23, %c0_24] : memref<1x3x2x32xbf16, #tpu.memory_space<vmem>>, vector<1x1x2x32xbf16>
    %13 = vector.shape_cast %12 : vector<1x1x2x32xbf16> to vector<2x32xbf16>
    %c0_25 = arith.constant 0 : index
    %c1_26 = arith.constant 1 : index
    %c0_27 = arith.constant 0 : index
    %c0_28 = arith.constant 0 : index
    %14 = vector.load %arg4[%c0_25, %c1_26, %c0_27, %c0_28] : memref<1x3x2x32xbf16, #tpu.memory_space<vmem>>, vector<1x1x2x32xbf16>
    %15 = vector.shape_cast %14 : vector<1x1x2x32xbf16> to vector<2x32xbf16>
    %c0_29 = arith.constant 0 : index
    %c2_30 = arith.constant 2 : index
    %c0_31 = arith.constant 0 : index
    %c0_32 = arith.constant 0 : index
    %16 = vector.load %arg4[%c0_29, %c2_30, %c0_31, %c0_32] : memref<1x3x2x32xbf16, #tpu.memory_space<vmem>>, vector<1x1x2x32xbf16>
    %17 = vector.shape_cast %16 : vector<1x1x2x32xbf16> to vector<2x32xbf16>
    %c0_33 = arith.constant 0 : index
    %c0_34 = arith.constant 0 : index
    %c0_35 = arith.constant 0 : index
    %18 = vector.load %arg5[%c0_33, %c0_34, %c0_35] : memref<1x32x64xbf16, #tpu.memory_space<vmem>>, vector<1x32x64xbf16>
    %19 = vector.shape_cast %18 : vector<1x32x64xbf16> to vector<32x64xbf16>
    %c0_36 = arith.constant 0 : index
    %c0_37 = arith.constant 0 : index
    %c0_38 = arith.constant 0 : index
    %20 = vector.load %arg6[%c0_36, %c0_37, %c0_38] : memref<1x32x32xbf16, #tpu.memory_space<vmem>>, vector<1x32x32xbf16>
    %21 = vector.shape_cast %20 : vector<1x32x32xbf16> to vector<32x32xbf16>
    %c0_39 = arith.constant 0 : index
    %c0_40 = arith.constant 0 : index
    %c0_41 = arith.constant 0 : index
    %22 = vector.load %arg7[%c0_39, %c0_40, %c0_41] : memref<1x4x3xf32, #tpu.memory_space<vmem>>, vector<1x4x3xf32>
    %23 = vector.shape_cast %22 : vector<1x4x3xf32> to vector<4x3xf32>
    %24 = arith.addf %1, %3 : vector<2x32xf32>
    %25 = arith.addf %24, %5 : vector<2x32xf32>
    %cst = arith.constant 0.333333343 : f32
    %26 = vector.broadcast %cst : f32 to vector<2x32xf32>
    %27 = arith.mulf %25, %26 : vector<2x32xf32>
    %28 = arith.truncf %27 : vector<2x32xf32> to vector<2x32xbf16>
    %cst_42 = arith.constant dense<0.000000e+00> : vector<2x64xf32>
    %29 = tpu.matmul %28, %19, %cst_42 {dimension_numbers = #tpu.dot_dimension_numbers<[1], [0], [0], [1], [0, 0, 1, 1], [], []>} : vector<2x32xbf16>, vector<32x64xbf16>, vector<2x64xf32> -> vector<2x64xf32>
    %30 = vector.extract_strided_slice %29 {offsets = [0, 0], sizes = [2, 32], strides = [1, 1]} : vector<2x64xf32> to vector<2x32xf32>
    %31 = vector.extract_strided_slice %29 {offsets = [0, 32], sizes = [2, 32], strides = [1, 1]} : vector<2x64xf32> to vector<2x32xf32>
    %32 = arith.mulf %1, %30 : vector<2x32xf32>
    %cst_43 = arith.constant dense<0.000000e+00> : vector<2xf32>
    %33 = vector.multi_reduction <add>, %32, %cst_43 [1] : vector<2x32xf32> to vector<2xf32>
    %34 = vector.shape_cast %33 : vector<2xf32> to vector<2x1xf32>
    %35 = arith.mulf %3, %30 : vector<2x32xf32>
    %cst_44 = arith.constant dense<0.000000e+00> : vector<2xf32>
    %36 = vector.multi_reduction <add>, %35, %cst_44 [1] : vector<2x32xf32> to vector<2xf32>
    %37 = vector.shape_cast %36 : vector<2xf32> to vector<2x1xf32>
    %38 = arith.mulf %5, %30 : vector<2x32xf32>
    %cst_45 = arith.constant dense<0.000000e+00> : vector<2xf32>
    %39 = vector.multi_reduction <add>, %38, %cst_45 [1] : vector<2x32xf32> to vector<2xf32>
    %40 = vector.shape_cast %39 : vector<2xf32> to vector<2x1xf32>
    %41 = arith.extf %7 : vector<2x32xbf16> to vector<2x32xf32>
    %42 = arith.mulf %41, %31 : vector<2x32xf32>
    %cst_46 = arith.constant dense<0.000000e+00> : vector<2xf32>
    %43 = vector.multi_reduction <add>, %42, %cst_46 [1] : vector<2x32xf32> to vector<2xf32>
    %44 = vector.shape_cast %43 : vector<2xf32> to vector<2x1xf32>
    %45 = arith.extf %9 : vector<2x32xbf16> to vector<2x32xf32>
    %46 = arith.mulf %45, %31 : vector<2x32xf32>
    %cst_47 = arith.constant dense<0.000000e+00> : vector<2xf32>
    %47 = vector.multi_reduction <add>, %46, %cst_47 [1] : vector<2x32xf32> to vector<2xf32>
    %48 = vector.shape_cast %47 : vector<2xf32> to vector<2x1xf32>
    %49 = arith.extf %11 : vector<2x32xbf16> to vector<2x32xf32>
    %50 = arith.mulf %49, %31 : vector<2x32xf32>
    %cst_48 = arith.constant dense<0.000000e+00> : vector<2xf32>
    %51 = vector.multi_reduction <add>, %50, %cst_48 [1] : vector<2x32xf32> to vector<2xf32>
    %52 = vector.shape_cast %51 : vector<2xf32> to vector<2x1xf32>
    %53 = vector.extract_strided_slice %23 {offsets = [0, 0], sizes = [1, 3], strides = [1, 1]} : vector<4x3xf32> to vector<1x3xf32>
    %54 = vector.extract_strided_slice %23 {offsets = [1, 0], sizes = [1, 3], strides = [1, 1]} : vector<4x3xf32> to vector<1x3xf32>
    %55 = arith.addf %34, %37 : vector<2x1xf32>
    %56 = arith.addf %55, %40 : vector<2x1xf32>
    %cst_49 = arith.constant 0.333333343 : f32
    %57 = vector.broadcast %cst_49 : f32 to vector<2x1xf32>
    %58 = arith.mulf %56, %57 : vector<2x1xf32>
    %59 = arith.subf %34, %58 : vector<2x1xf32>
    %60 = arith.subf %37, %58 : vector<2x1xf32>
    %61 = arith.subf %40, %58 : vector<2x1xf32>
    %62 = arith.mulf %59, %59 : vector<2x1xf32>
    %63 = arith.mulf %60, %60 : vector<2x1xf32>
    %64 = arith.addf %62, %63 : vector<2x1xf32>
    %65 = arith.mulf %61, %61 : vector<2x1xf32>
    %66 = arith.addf %64, %65 : vector<2x1xf32>
    %cst_50 = arith.constant 0.333333343 : f32
    %67 = vector.broadcast %cst_50 : f32 to vector<2x1xf32>
    %68 = arith.mulf %66, %67 : vector<2x1xf32>
    %cst_51 = arith.constant 9.99999974E-6 : f32
    %69 = vector.broadcast %cst_51 : f32 to vector<2x1xf32>
    %70 = arith.addf %68, %69 : vector<2x1xf32>
    %71 = math.rsqrt %70 : vector<2x1xf32>
    %72 = arith.mulf %59, %71 : vector<2x1xf32>
    %73 = vector.extract_strided_slice %53 {offsets = [0, 0], sizes = [1, 1], strides = [1, 1]} : vector<1x3xf32> to vector<1x1xf32>
    %74 = vector.broadcast %73 : vector<1x1xf32> to vector<2x1xf32>
    %75 = arith.mulf %72, %74 : vector<2x1xf32>
    %76 = vector.extract_strided_slice %54 {offsets = [0, 0], sizes = [1, 1], strides = [1, 1]} : vector<1x3xf32> to vector<1x1xf32>
    %77 = vector.broadcast %76 : vector<1x1xf32> to vector<2x1xf32>
    %78 = arith.addf %75, %77 : vector<2x1xf32>
    %79 = arith.mulf %60, %71 : vector<2x1xf32>
    %80 = vector.extract_strided_slice %53 {offsets = [0, 1], sizes = [1, 1], strides = [1, 1]} : vector<1x3xf32> to vector<1x1xf32>
    %81 = vector.broadcast %80 : vector<1x1xf32> to vector<2x1xf32>
    %82 = arith.mulf %79, %81 : vector<2x1xf32>
    %83 = vector.extract_strided_slice %54 {offsets = [0, 1], sizes = [1, 1], strides = [1, 1]} : vector<1x3xf32> to vector<1x1xf32>
    %84 = vector.broadcast %83 : vector<1x1xf32> to vector<2x1xf32>
    %85 = arith.addf %82, %84 : vector<2x1xf32>
    %86 = arith.mulf %61, %71 : vector<2x1xf32>
    %87 = vector.extract_strided_slice %53 {offsets = [0, 2], sizes = [1, 1], strides = [1, 1]} : vector<1x3xf32> to vector<1x1xf32>
    %88 = vector.broadcast %87 : vector<1x1xf32> to vector<2x1xf32>
    %89 = arith.mulf %86, %88 : vector<2x1xf32>
    %90 = vector.extract_strided_slice %54 {offsets = [0, 2], sizes = [1, 1], strides = [1, 1]} : vector<1x3xf32> to vector<1x1xf32>
    %91 = vector.broadcast %90 : vector<1x1xf32> to vector<2x1xf32>
    %92 = arith.addf %89, %91 : vector<2x1xf32>
    %93 = arith.maximumf %78, %85 : vector<2x1xf32>
    %94 = arith.maximumf %93, %92 : vector<2x1xf32>
    %95 = arith.subf %78, %94 : vector<2x1xf32>
    %96 = math.exp %95 : vector<2x1xf32>
    %97 = arith.subf %85, %94 : vector<2x1xf32>
    %98 = math.exp %97 : vector<2x1xf32>
    %99 = arith.subf %92, %94 : vector<2x1xf32>
    %100 = math.exp %99 : vector<2x1xf32>
    %101 = arith.addf %96, %98 : vector<2x1xf32>
    %102 = arith.addf %101, %100 : vector<2x1xf32>
    %cst_52 = arith.constant 1.000000e+00 : f32
    %103 = vector.broadcast %cst_52 : f32 to vector<2x1xf32>
    %104 = arith.divf %103, %102 : vector<2x1xf32>
    %105 = arith.mulf %96, %104 : vector<2x1xf32>
    %106 = arith.mulf %98, %104 : vector<2x1xf32>
    %107 = arith.mulf %100, %104 : vector<2x1xf32>
    %108 = vector.extract_strided_slice %23 {offsets = [2, 0], sizes = [1, 3], strides = [1, 1]} : vector<4x3xf32> to vector<1x3xf32>
    %109 = vector.extract_strided_slice %23 {offsets = [3, 0], sizes = [1, 3], strides = [1, 1]} : vector<4x3xf32> to vector<1x3xf32>
    %110 = arith.addf %44, %48 : vector<2x1xf32>
    %111 = arith.addf %110, %52 : vector<2x1xf32>
    %cst_53 = arith.constant 0.333333343 : f32
    %112 = vector.broadcast %cst_53 : f32 to vector<2x1xf32>
    %113 = arith.mulf %111, %112 : vector<2x1xf32>
    %114 = arith.subf %44, %113 : vector<2x1xf32>
    %115 = arith.subf %48, %113 : vector<2x1xf32>
    %116 = arith.subf %52, %113 : vector<2x1xf32>
    %117 = arith.mulf %114, %114 : vector<2x1xf32>
    %118 = arith.mulf %115, %115 : vector<2x1xf32>
    %119 = arith.addf %117, %118 : vector<2x1xf32>
    %120 = arith.mulf %116, %116 : vector<2x1xf32>
    %121 = arith.addf %119, %120 : vector<2x1xf32>
    %cst_54 = arith.constant 0.333333343 : f32
    %122 = vector.broadcast %cst_54 : f32 to vector<2x1xf32>
    %123 = arith.mulf %121, %122 : vector<2x1xf32>
    %cst_55 = arith.constant 9.99999974E-6 : f32
    %124 = vector.broadcast %cst_55 : f32 to vector<2x1xf32>
    %125 = arith.addf %123, %124 : vector<2x1xf32>
    %126 = math.rsqrt %125 : vector<2x1xf32>
    %127 = arith.mulf %114, %126 : vector<2x1xf32>
    %128 = vector.extract_strided_slice %108 {offsets = [0, 0], sizes = [1, 1], strides = [1, 1]} : vector<1x3xf32> to vector<1x1xf32>
    %129 = vector.broadcast %128 : vector<1x1xf32> to vector<2x1xf32>
    %130 = arith.mulf %127, %129 : vector<2x1xf32>
    %131 = vector.extract_strided_slice %109 {offsets = [0, 0], sizes = [1, 1], strides = [1, 1]} : vector<1x3xf32> to vector<1x1xf32>
    %132 = vector.broadcast %131 : vector<1x1xf32> to vector<2x1xf32>
    %133 = arith.addf %130, %132 : vector<2x1xf32>
    %134 = arith.mulf %115, %126 : vector<2x1xf32>
    %135 = vector.extract_strided_slice %108 {offsets = [0, 1], sizes = [1, 1], strides = [1, 1]} : vector<1x3xf32> to vector<1x1xf32>
    %136 = vector.broadcast %135 : vector<1x1xf32> to vector<2x1xf32>
    %137 = arith.mulf %134, %136 : vector<2x1xf32>
    %138 = vector.extract_strided_slice %109 {offsets = [0, 1], sizes = [1, 1], strides = [1, 1]} : vector<1x3xf32> to vector<1x1xf32>
    %139 = vector.broadcast %138 : vector<1x1xf32> to vector<2x1xf32>
    %140 = arith.addf %137, %139 : vector<2x1xf32>
    %141 = arith.mulf %116, %126 : vector<2x1xf32>
    %142 = vector.extract_strided_slice %108 {offsets = [0, 2], sizes = [1, 1], strides = [1, 1]} : vector<1x3xf32> to vector<1x1xf32>
    %143 = vector.broadcast %142 : vector<1x1xf32> to vector<2x1xf32>
    %144 = arith.mulf %141, %143 : vector<2x1xf32>
    %145 = vector.extract_strided_slice %109 {offsets = [0, 2], sizes = [1, 1], strides = [1, 1]} : vector<1x3xf32> to vector<1x1xf32>
    %146 = vector.broadcast %145 : vector<1x1xf32> to vector<2x1xf32>
    %147 = arith.addf %144, %146 : vector<2x1xf32>
    %148 = arith.maximumf %133, %140 : vector<2x1xf32>
    %149 = arith.maximumf %148, %147 : vector<2x1xf32>
    %150 = arith.subf %133, %149 : vector<2x1xf32>
    %151 = math.exp %150 : vector<2x1xf32>
    %152 = arith.subf %140, %149 : vector<2x1xf32>
    %153 = math.exp %152 : vector<2x1xf32>
    %154 = arith.subf %147, %149 : vector<2x1xf32>
    %155 = math.exp %154 : vector<2x1xf32>
    %156 = arith.addf %151, %153 : vector<2x1xf32>
    %157 = arith.addf %156, %155 : vector<2x1xf32>
    %cst_56 = arith.constant 1.000000e+00 : f32
    %158 = vector.broadcast %cst_56 : f32 to vector<2x1xf32>
    %159 = arith.divf %158, %157 : vector<2x1xf32>
    %160 = arith.mulf %151, %159 : vector<2x1xf32>
    %161 = arith.mulf %153, %159 : vector<2x1xf32>
    %162 = arith.mulf %155, %159 : vector<2x1xf32>
    %163 = arith.extf %13 : vector<2x32xbf16> to vector<2x32xf32>
    %164 = vector.broadcast %160 : vector<2x1xf32> to vector<2x32xf32>
    %165 = arith.mulf %164, %163 : vector<2x32xf32>
    %166 = arith.extf %15 : vector<2x32xbf16> to vector<2x32xf32>
    %167 = vector.broadcast %161 : vector<2x1xf32> to vector<2x32xf32>
    %168 = arith.mulf %167, %166 : vector<2x32xf32>
    %169 = arith.addf %165, %168 : vector<2x32xf32>
    %170 = arith.extf %17 : vector<2x32xbf16> to vector<2x32xf32>
    %171 = vector.broadcast %162 : vector<2x1xf32> to vector<2x32xf32>
    %172 = arith.mulf %171, %170 : vector<2x32xf32>
    %173 = arith.addf %169, %172 : vector<2x32xf32>
    %174 = arith.truncf %173 : vector<2x32xf32> to vector<2x32xbf16>
    %cst_57 = arith.constant dense<0.000000e+00> : vector<2x32xf32>
    %175 = tpu.matmul %174, %21, %cst_57 {dimension_numbers = #tpu.dot_dimension_numbers<[1], [0], [0], [1], [0, 0, 1, 1], [], []>} : vector<2x32xbf16>, vector<32x32xbf16>, vector<2x32xf32> -> vector<2x32xf32>
    %176 = vector.broadcast %105 : vector<2x1xf32> to vector<2x32xf32>
    %177 = arith.mulf %176, %175 : vector<2x32xf32>
    %178 = arith.addf %177, %1 : vector<2x32xf32>
    %c0_58 = arith.constant 0 : index
    %c0_59 = arith.constant 0 : index
    %c0_60 = arith.constant 0 : index
    %c0_61 = arith.constant 0 : index
    %179 = vector.load %arg8[%c0_58, %c0_59, %c0_60, %c0_61] : memref<1x3x2x32xf32, #tpu.memory_space<vmem>>, vector<1x1x2x32xf32>
    %180 = vector.shape_cast %179 : vector<1x1x2x32xf32> to vector<2x32xf32>
    %181 = vector.shape_cast %178 : vector<2x32xf32> to vector<1x1x2x32xf32>
    tpu.vector_store %arg8[%c0_58, %c0_59, %c0_60, %c0_61], %181 {strides = array<i32>} : memref<1x3x2x32xf32, #tpu.memory_space<vmem>>, vector<1x1x2x32xf32>,
    %182 = vector.broadcast %106 : vector<2x1xf32> to vector<2x32xf32>
    %183 = arith.mulf %182, %175 : vector<2x32xf32>
    %184 = arith.addf %183, %3 : vector<2x32xf32>
    %c0_62 = arith.constant 0 : index
    %c1_63 = arith.constant 1 : index
    %c0_64 = arith.constant 0 : index
    %c0_65 = arith.constant 0 : index
    %185 = vector.load %arg8[%c0_62, %c1_63, %c0_64, %c0_65] : memref<1x3x2x32xf32, #tpu.memory_space<vmem>>, vector<1x1x2x32xf32>
    %186 = vector.shape_cast %185 : vector<1x1x2x32xf32> to vector<2x32xf32>
    %187 = vector.shape_cast %184 : vector<2x32xf32> to vector<1x1x2x32xf32>
    tpu.vector_store %arg8[%c0_62, %c1_63, %c0_64, %c0_65], %187 {strides = array<i32>} : memref<1x3x2x32xf32, #tpu.memory_space<vmem>>, vector<1x1x2x32xf32>,
    %188 = vector.broadcast %107 : vector<2x1xf32> to vector<2x32xf32>
    %189 = arith.mulf %188, %175 : vector<2x32xf32>
    %190 = arith.addf %189, %5 : vector<2x32xf32>
    %c0_66 = arith.constant 0 : index
    %c2_67 = arith.constant 2 : index
    %c0_68 = arith.constant 0 : index
    %c0_69 = arith.constant 0 : index
    %191 = vector.load %arg8[%c0_66, %c2_67, %c0_68, %c0_69] : memref<1x3x2x32xf32, #tpu.memory_space<vmem>>, vector<1x1x2x32xf32>
    %192 = vector.shape_cast %191 : vector<1x1x2x32xf32> to vector<2x32xf32>
    %193 = vector.shape_cast %190 : vector<2x32xf32> to vector<1x1x2x32xf32>
    tpu.vector_store %arg8[%c0_66, %c2_67, %c0_68, %c0_69], %193 {strides = array<i32>} : memref<1x3x2x32xf32, #tpu.memory_space<vmem>>, vector<1x1x2x32xf32>,
    return
  }
  func.func @transform_0(%arg0: i32, %arg1: i32) -> (i32, i32, i32, i32) {
    %c0_i32 = arith.constant 0 : i32
    %c0_i32_0 = arith.constant 0 : i32
    %c0_i32_1 = arith.constant 0 : i32
    return %arg0, %c0_i32, %arg1, %c0_i32_0 : i32, i32, i32, i32
  }
  func.func @transform_1(%arg0: i32, %arg1: i32) -> (i32, i32, i32, i32) {
    %c0_i32 = arith.constant 0 : i32
    %c0_i32_0 = arith.constant 0 : i32
    %c0_i32_1 = arith.constant 0 : i32
    return %arg0, %c0_i32, %arg1, %c0_i32_0 : i32, i32, i32, i32
  }
  func.func @transform_2(%arg0: i32, %arg1: i32) -> (i32, i32, i32, i32) {
    %c0_i32 = arith.constant 0 : i32
    %c0_i32_0 = arith.constant 0 : i32
    %c0_i32_1 = arith.constant 0 : i32
    return %arg0, %c0_i32, %arg1, %c0_i32_0 : i32, i32, i32, i32
  }
  func.func @transform_3(%arg0: i32, %arg1: i32) -> (i32, i32, i32) {
    %c0_i32 = arith.constant 0 : i32
    %c0_i32_0 = arith.constant 0 : i32
    %c0_i32_1 = arith.constant 0 : i32
    return %arg0, %c0_i32, %c0_i32_0 : i32, i32, i32
  }
  func.func @transform_4(%arg0: i32, %arg1: i32) -> (i32, i32, i32) {
    %c0_i32 = arith.constant 0 : i32
    %c0_i32_0 = arith.constant 0 : i32
    %c0_i32_1 = arith.constant 0 : i32
    return %arg0, %c0_i32, %c0_i32_0 : i32, i32, i32
  }
  func.func @transform_5(%arg0: i32, %arg1: i32) -> (i32, i32, i32) {
    %c0_i32 = arith.constant 0 : i32
    %c0_i32_0 = arith.constant 0 : i32
    %c0_i32_1 = arith.constant 0 : i32
    return %arg0, %c0_i32, %c0_i32_0 : i32, i32, i32
  }
  func.func @transform_6(%arg0: i32, %arg1: i32) -> (i32, i32, i32, i32) {
    %c0_i32 = arith.constant 0 : i32
    %c0_i32_0 = arith.constant 0 : i32
    %c0_i32_1 = arith.constant 0 : i32
    return %arg0, %c0_i32, %arg1, %c0_i32_0 : i32, i32, i32, i32
  }
}

</mosaic_0001>

<llo_original>
// kernel: tpu_custom_call.1
$region0: #{tpu_custom_call.1}
  #allocation0 [shape = 'u32[]', space=smem, size = 0x4, offset = 0x4, fixed_abs, tag = 'smem constant byte address 0x4 - core index']
  #allocation1 [shape = 'u32[144,128]{1,0:T(1,128)}', space=vmem, size = 0x12000, scoped, tag = 'internal scratch']
  %s0 = inlined_call_operand.vmem [shape: f32[4,3,2,32], index: 0, kind: input, shape index: {}]
  %s1 = inlined_call_operand.hbm [shape: bf16[4,3,2,32], index: 1, kind: input, shape index: {}]
  %s2 = inlined_call_operand.hbm [shape: bf16[4,3,2,32], index: 2, kind: input, shape index: {}]
  %s3 = inlined_call_operand.hbm [shape: bf16[4,32,64], index: 3, kind: input, shape index: {}]
  %s4 = inlined_call_operand.hbm [shape: bf16[4,32,32], index: 4, kind: input, shape index: {}]
  %s5 = inlined_call_operand.vmem [shape: f32[4,4,3], index: 5, kind: input, shape index: {}]
  %s6 = inlined_call_operand.hbm [shape: f32[4,3,2,32], index: 6, kind: output, shape index: {}]
  %s7 = sld [smem:[#allocation0]]
  $region73: #{tpu_custom_call.1} parent=0
    _
  %s9 = ssub.s32 1, %s7
  %s10 = scalar_select 0, %s9, %s7
  $region1: #{tpu_custom_call.1} parent=0
    #allocation2 [shape = 'u8[3072]{0}', space=vmem, size = 0xc00, scoped, tag = 'input window, operand 1']
    #allocation3 [shape = 's32[2]{0}', space=sflag, size = 0x8, scoped, tag = 'scoped memory for tpu_custom_call.1']
    #allocation4 [shape = 's32[2]{0}', space=sflag, size = 0x8, scoped, tag = 'scoped memory for tpu_custom_call.1']
    #allocation5 [shape = 'u8[3072]{0}', space=vmem, size = 0xc00, scoped, tag = 'input window, operand 2']
    #allocation6 [shape = 's32[2]{0}', space=sflag, size = 0x8, scoped, tag = 'scoped memory for tpu_custom_call.1']
    #allocation7 [shape = 'u8[16384]{0}', space=vmem, size = 0x4000, scoped, tag = 'input window, operand 3']
    #allocation8 [shape = 'u8[16384]{0}', space=vmem, size = 0x4000, scoped, tag = 'input window, operand 4']
    #allocation9 [shape = 's32[2]{0}', space=sflag, size = 0x8, scoped, tag = 'scoped memory for tpu_custom_call.1']
    #allocation10 [shape = 'u8[6144]{0}', space=vmem, size = 0x1800, scoped, tag = 'output window, operand 0']
    %11 = vsyncpa [#allocation3], 0
    %s12 = scalar_lea.sflag [#allocation3], 1
    %13 = vsyncpa %s12, 0
    %14 = vsyncpa [#allocation6], 0
    %s15 = scalar_lea.sflag [#allocation6], 1
    %16 = vsyncpa %s15, 0
    %17 = vsyncpa [#allocation9], 0
    %s18 = scalar_lea.sflag [#allocation9], 1
    %19 = vsyncpa %s18, 0
    %20 = vsyncpa [#allocation4], 0
    %s21 = scalar_lea.sflag [#allocation4], 1
    %22 = vsyncpa %s21, 0
    loop: start=0, step=1, limit=6
    $region2: #{tpu_custom_call.1} parent=1 // loop_pre_header
      _
    $region3: #{tpu_custom_call.1} parent=1 // loop_header
      %s24 = sphi 0, %s28
      %p25 = scmp.ge.s32.totalorder %s24, 6
      %s31 = sphi 0, %s43
      %s32 = sphi 0, %s39
      %s33 = sphi 0, %s31
      %s34 = sphi 0, %s32
      %s35 = sphi 0, %s33
      %s36 = sphi 0, %s34
      %s48 = sphi 0, %s50
      %s51 = sphi 0, %s48
      %s52 = sphi 0, %s51
      %s68 = sphi 0, %s52
      %s76 = sphi 0, %s78
      %s79 = sphi 0, %s76
      %s80 = sphi 0, %s79
      %s96 = sphi 0, %s80
      %s104 = sphi 0, %s106
      %s107 = sphi 0, %s104
      %s108 = sphi 0, %s107
      %s124 = sphi 0, %s108
      %s130 = sphi 0, %s132
      %s133 = sphi 0, %s130
      %s134 = sphi 0, %s133
      %s150 = sphi 0, %s134
      %s156 = sphi 0, %s158
      %s159 = sphi 0, %s156
      %s160 = sphi 0, %s159
      %s176 = sphi 0, %s160
      %s182 = sphi 0, %s184
      %s185 = sphi 0, %s182
      %s186 = sphi 0, %s185
      %s202 = sphi 0, %s186
      %s210 = sphi 0, %s212
      %s213 = sphi 0, %s210
      %s214 = sphi 0, %s213
      %s230 = sphi 0, %s214
    $region4: #{tpu_custom_call.1} parent=1 // loop_header_branch
      %27 = sbr.rel (%p25) target = $region8
    $region5: #{tpu_custom_call.1} parent=1 // loop_body
      %s29 = ssub.s32 %s24, 1
      %s30 = ssub.s32 %s24, 2
      %s37 = sadd.s32 1, %s32
      %p38 = scmp.ge.s32.totalorder %s37, 1
      %s39 = scalar_select %p38, 0, %s37
      %s40 = sadd.s32 1, %s31
      %s41 = scalar_select %p38, %s40, %s31
      %p42 = scmp.ge.s32.totalorder %s41, 4
      %s43 = scalar_select %p42, 0, %s41
      %s44 = ssub.s32 %s31, %s43
      %s45 = ssub.s32 %s32, %s39
      %s46 = sor.u32 %s44, %s45
      %p47 = scmp.eq.s32.totalorder %s46, 0
      %s49 = sadd.s32 %s48, 1
      %s50 = scalar_select %p47, %s48, %s49
      %p53 = pneg %p47
      %p54 = scmp.eq.s32.totalorder %s24, 3
      %p55 = por %p53, %p54
      %p56 = scmp.ne.s32.totalorder %s48, %s51
      %p57 = scmp.eq.s32.totalorder %s24, 0
      %p58 = por %p56, %p57
      %p59 = scmp.ne.s32.totalorder %s48, %s51
      %p60 = scmp.eq.s32.totalorder %s29, 3
      %p61 = por %p59, %p60
      %p62 = scmp.ne.s32.totalorder %s51, %s52
      %p63 = scmp.eq.s32.totalorder %s29, 0
      %p64 = por %p62, %p63
      %p65 = scmp.ne.s32.totalorder %s51, %s52
      %p66 = scmp.eq.s32.totalorder %s30, 3
      %p67 = por %p65, %p66
      %p69 = scmp.ne.s32.totalorder %s52, %s68
      %p70 = scmp.eq.s32.totalorder %s30, 0
      %p71 = por %p69, %p70
      %s72 = ssub.s32 %s31, %s43
      %s73 = ssub.s32 %s32, %s39
      %s74 = sor.u32 %s72, %s73
      %p75 = scmp.eq.s32.totalorder %s74, 0
      %s77 = sadd.s32 %s76, 1
      %s78 = scalar_select %p75, %s76, %s77
      %p81 = pneg %p75
      %p82 = scmp.eq.s32.totalorder %s24, 3
      %p83 = por %p81, %p82
      %p84 = scmp.ne.s32.totalorder %s76, %s79
      %p85 = scmp.eq.s32.totalorder %s24, 0
      %p86 = por %p84, %p85
      %p87 = scmp.ne.s32.totalorder %s76, %s79
      %p88 = scmp.eq.s32.totalorder %s29, 3
      %p89 = por %p87, %p88
      %p90 = scmp.ne.s32.totalorder %s79, %s80
      %p91 = scmp.eq.s32.totalorder %s29, 0
      %p92 = por %p90, %p91
      %p93 = scmp.ne.s32.totalorder %s79, %s80
      %p94 = scmp.eq.s32.totalorder %s30, 3
      %p95 = por %p93, %p94
      %p97 = scmp.ne.s32.totalorder %s80, %s96
      %p98 = scmp.eq.s32.totalorder %s30, 0
      %p99 = por %p97, %p98
      %s100 = ssub.s32 %s31, %s43
      %s101 = ssub.s32 %s32, %s39
      %s102 = sor.u32 %s100, %s101
      %p103 = scmp.eq.s32.totalorder %s102, 0
      %s105 = sadd.s32 %s104, 1
      %s106 = scalar_select %p103, %s104, %s105
      %p109 = pneg %p103
      %p110 = scmp.eq.s32.totalorder %s24, 3
      %p111 = por %p109, %p110
      %p112 = scmp.ne.s32.totalorder %s104, %s107
      %p113 = scmp.eq.s32.totalorder %s24, 0
      %p114 = por %p112, %p113
      %p115 = scmp.ne.s32.totalorder %s104, %s107
      %p116 = scmp.eq.s32.totalorder %s29, 3
      %p117 = por %p115, %p116
      %p118 = scmp.ne.s32.totalorder %s107, %s108
      %p119 = scmp.eq.s32.totalorder %s29, 0
      %p120 = por %p118, %p119
      %p121 = scmp.ne.s32.totalorder %s107, %s108
      %p122 = scmp.eq.s32.totalorder %s30, 3
      %p123 = por %p121, %p122
      %p125 = scmp.ne.s32.totalorder %s108, %s124
      %p126 = scmp.eq.s32.totalorder %s30, 0
      %p127 = por %p125, %p126
      %s128 = ssub.s32 %s31, %s43
      %p129 = scmp.eq.s32.totalorder %s128, 0
      %s131 = sadd.s32 %s130, 1
      %s132 = scalar_select %p129, %s130, %s131
      %p135 = pneg %p129
      %p136 = scmp.eq.s32.totalorder %s24, 3
      %p137 = por %p135, %p136
      %p138 = scmp.ne.s32.totalorder %s130, %s133
      %p139 = scmp.eq.s32.totalorder %s24, 0
      %p140 = por %p138, %p139
      %p141 = scmp.ne.s32.totalorder %s130, %s133
      %p142 = scmp.eq.s32.totalorder %s29, 3
      %p143 = por %p141, %p142
      %p144 = scmp.ne.s32.totalorder %s133, %s134
      %p145 = scmp.eq.s32.totalorder %s29, 0
      %p146 = por %p144, %p145
      %p147 = scmp.ne.s32.totalorder %s133, %s134
      %p148 = scmp.eq.s32.totalorder %s30, 3
      %p149 = por %p147, %p148
      %p151 = scmp.ne.s32.totalorder %s134, %s150
      %p152 = scmp.eq.s32.totalorder %s30, 0
      %p153 = por %p151, %p152
      %s154 = ssub.s32 %s31, %s43
      %p155 = scmp.eq.s32.totalorder %s154, 0
      %s157 = sadd.s32 %s156, 1
      %s158 = scalar_select %p155, %s156, %s157
      %p161 = pneg %p155
      %p162 = scmp.eq.s32.totalorder %s24, 3
      %p163 = por %p161, %p162
      %p164 = scmp.ne.s32.totalorder %s156, %s159
      %p165 = scmp.eq.s32.totalorder %s24, 0
      %p166 = por %p164, %p165
      %p167 = scmp.ne.s32.totalorder %s156, %s159
      %p168 = scmp.eq.s32.totalorder %s29, 3
      %p169 = por %p167, %p168
      %p170 = scmp.ne.s32.totalorder %s159, %s160
      %p171 = scmp.eq.s32.totalorder %s29, 0
      %p172 = por %p170, %p171
      %p173 = scmp.ne.s32.totalorder %s159, %s160
      %p174 = scmp.eq.s32.totalorder %s30, 3
      %p175 = por %p173, %p174
      %p177 = scmp.ne.s32.totalorder %s160, %s176
      %p178 = scmp.eq.s32.totalorder %s30, 0
      %p179 = por %p177, %p178
      %s180 = ssub.s32 %s31, %s43
      %p181 = scmp.eq.s32.totalorder %s180, 0
      %s183 = sadd.s32 %s182, 1
      %s184 = scalar_select %p181, %s182, %s183
      %p187 = pneg %p181
      %p188 = scmp.eq.s32.totalorder %s24, 3
      %p189 = por %p187, %p188
      %p190 = scmp.ne.s32.totalorder %s182, %s185
      %p191 = scmp.eq.s32.totalorder %s24, 0
      %p192 = por %p190, %p191
      %p193 = scmp.ne.s32.totalorder %s182, %s185
      %p194 = scmp.eq.s32.totalorder %s29, 3
      %p195 = por %p193, %p194
      %p196 = scmp.ne.s32.totalorder %s185, %s186
      %p197 = scmp.eq.s32.totalorder %s29, 0
      %p198 = por %p196, %p197
      %p199 = scmp.ne.s32.totalorder %s185, %s186
      %p200 = scmp.eq.s32.totalorder %s30, 3
      %p201 = por %p199, %p200
      %p203 = scmp.ne.s32.totalorder %s186, %s202
      %p204 = scmp.eq.s32.totalorder %s30, 0
      %p205 = por %p203, %p204
      %s206 = ssub.s32 %s31, %s43
      %s207 = ssub.s32 %s32, %s39
      %s208 = sor.u32 %s206, %s207
      %p209 = scmp.eq.s32.totalorder %s208, 0
      %s211 = sadd.s32 %s210, 1
      %s212 = scalar_select %p209, %s210, %s211
      %p215 = pneg %p209
      %p216 = scmp.eq.s32.totalorder %s24, 3
      %p217 = por %p215, %p216
      %p218 = scmp.ne.s32.totalorder %s210, %s213
      %p219 = scmp.eq.s32.totalorder %s24, 0
      %p220 = por %p218, %p219
      %p221 = scmp.ne.s32.totalorder %s210, %s213
      %p222 = scmp.eq.s32.totalorder %s29, 3
      %p223 = por %p221, %p222
      %p224 = scmp.ne.s32.totalorder %s213, %s214
      %p225 = scmp.eq.s32.totalorder %s29, 0
      %p226 = por %p224, %p225
      %p227 = scmp.ne.s32.totalorder %s213, %s214
      %p228 = scmp.eq.s32.totalorder %s30, 3
      %p229 = por %p227, %p228
      %p231 = scmp.ne.s32.totalorder %s214, %s230
      %p232 = scmp.eq.s32.totalorder %s30, 0
      %p233 = por %p231, %p232
      %p234 = scmp.le.s32.totalorder 1, %s24
      %p235 = scmp.lt.s32.totalorder %s24, 5
      %p236 = pnand %p234, %p235
      %p237 = pneg %p236
      // Predicated region
      $region9: #{tpu_custom_call.1} parent=5 // pred_check
        _
      $region10: #{tpu_custom_call.1} parent=5 // pred_check_branch
        %239 = sbr.rel (%p236) target = $region12
      $region11: #{tpu_custom_call.1} parent=5 // pred_region
        %s240 = ssub.s32 %s24, 1
      $region12: #{tpu_custom_call.1} parent=5 // pred_fallthru
        _
      %p241 = scmp.lt.s32.totalorder %s24, 4
      // Predicated region
      $region13: #{tpu_custom_call.1} parent=5 // pred_check
        %p242 = pneg %p241
      $region14: #{tpu_custom_call.1} parent=5 // pred_check_branch
        %244 = sbr.rel (%p242) target = $region16
      $region15: #{tpu_custom_call.1} parent=5 // pred_region
        // Predicated region
        $region17: #{tpu_custom_call.1} parent=15 // pred_check
          %p245 = pneg %p58
        $region18: #{tpu_custom_call.1} parent=15 // pred_check_branch
          %247 = sbr.rel (%p245) target = $region20
        $region19: #{tpu_custom_call.1} parent=15 // pred_region
          %p248 = scmp.lt.s32.totalorder %s31, 3
          %s249 = scalar_select %p248, %s31, 3
          %p250 = scmp.lt.s32.totalorder %s32, 0
          %s251 = scalar_select %p250, %s32, 0
          %s252 = smul.addr %s249, 3
          %s253 = sadd.s32 %s251, %s252
          %s254 = smul.addr %s253, 2
          %s255 = scalar_lea.vmem %s0, %s254
        $region20: #{tpu_custom_call.1} parent=15 // pred_fallthru
          _
        // Predicated region
        $region21: #{tpu_custom_call.1} parent=15 // pred_check
          %p256 = pneg %p86
        $region22: #{tpu_custom_call.1} parent=15 // pred_check_branch
          %258 = sbr.rel (%p256) target = $region24
        $region23: #{tpu_custom_call.1} parent=15 // pred_region
          %s259 = sand.u32 %s76, 1
          %s260 = scalar_lea.sflag [#allocation3], %s259
          %s261 = sand.u32 %s76, 1
          %s262 = smul.addr %s261, 3
          %s263 = scalar_lea.vmem [#allocation2], %s262
          %s265 = ssub.s32 48, 48
          %266 = vsyncadd %s260, %s265
          %s267 = smul.addr %s31, 3
          %s268 = sadd.s32 %s32, %s267
          %s269 = smul.addr %s268, 16
          %s270 = scalar_lea.hbm %s1, %s269
          %s271 = sshll.u32 %s263, 4
          %s272 = int_to_ptr.vmem [resolvable:$true] %s271
          %277 = dma.hbm_to_vmem [thread:$0]  %s270, 48, %s272, %s260, 16, 16, 1
        $region24: #{tpu_custom_call.1} parent=15 // pred_fallthru
          _
        // Predicated region
        $region25: #{tpu_custom_call.1} parent=15 // pred_check
          %p278 = pneg %p114
        $region26: #{tpu_custom_call.1} parent=15 // pred_check_branch
          %280 = sbr.rel (%p278) target = $region28
        $region27: #{tpu_custom_call.1} parent=15 // pred_region
          %s281 = sand.u32 %s24, 1
          %s282 = scalar_lea.sflag [#allocation6], %s281
          %s283 = sand.u32 %s104, 1
          %s284 = smul.addr %s283, 3
          %s285 = scalar_lea.vmem [#allocation5], %s284
          %s287 = ssub.s32 48, 48
          %288 = vsyncadd %s282, %s287
          %s289 = smul.addr %s31, 3
          %s290 = sadd.s32 %s32, %s289
          %s291 = smul.addr %s290, 16
          %s292 = scalar_lea.hbm %s2, %s291
          %s293 = sshll.u32 %s285, 4
          %s294 = int_to_ptr.vmem [resolvable:$true] %s293
          %299 = dma.hbm_to_vmem [thread:$0]  %s292, 48, %s294, %s282, 16, 16, 1
        $region28: #{tpu_custom_call.1} parent=15 // pred_fallthru
          _
        // Predicated region
        $region29: #{tpu_custom_call.1} parent=15 // pred_check
          %p300 = pneg %p140
        $region30: #{tpu_custom_call.1} parent=15 // pred_check_branch
          %302 = sbr.rel (%p300) target = $region32
        $region31: #{tpu_custom_call.1} parent=15 // pred_region
          %s303 = sand.u32 %s24, 1
          %s304 = scalar_lea.sflag [#allocation6], %s303
          %s305 = sand.u32 %s130, 1
          %s306 = smul.addr %s305, 16
          %s307 = scalar_lea.vmem [#allocation7], %s306
          %s309 = ssub.s32 256, 256
          %310 = vsyncadd %s304, %s309
          %s311 = smul.addr %s31, 4
          %s312 = smul.addr %s311, 64
          %s313 = scalar_lea.hbm %s3, %s312
          %s314 = sshll.u32 %s307, 4
          %s315 = int_to_ptr.vmem [resolvable:$true] %s314
          %320 = dma.hbm_to_vmem [thread:$0]  %s313, 256, %s315, %s304, 64, 64, 4
        $region32: #{tpu_custom_call.1} parent=15 // pred_fallthru
          _
        // Predicated region
        $region33: #{tpu_custom_call.1} parent=15 // pred_check
          %p321 = pneg %p166
        $region34: #{tpu_custom_call.1} parent=15 // pred_check_branch
          %323 = sbr.rel (%p321) target = $region36
        $region35: #{tpu_custom_call.1} parent=15 // pred_region
          %s324 = sand.u32 %s156, 1
          %s325 = scalar_lea.sflag [#allocation9], %s324
          %s326 = sand.u32 %s156, 1
          %s327 = smul.addr %s326, 16
          %s328 = scalar_lea.vmem [#allocation8], %s327
          %s330 = ssub.s32 256, 256
          %331 = vsyncadd %s325, %s330
          %s332 = smul.addr %s31, 4
          %s333 = smul.addr %s332, 64
          %s334 = scalar_lea.hbm %s4, %s333
          %s335 = sshll.u32 %s328, 4
          %s336 = int_to_ptr.vmem [resolvable:$true] %s335
          %341 = dma.hbm_to_vmem [thread:$0]  %s334, 256, %s336, %s325, 64, 64, 4
        $region36: #{tpu_custom_call.1} parent=15 // pred_fallthru
          _
        // Predicated region
        $region37: #{tpu_custom_call.1} parent=15 // pred_check
          %p342 = pneg %p192
        $region38: #{tpu_custom_call.1} parent=15 // pred_check_branch
          %344 = sbr.rel (%p342) target = $region40
        $region39: #{tpu_custom_call.1} parent=15 // pred_region
          %p345 = scmp.lt.s32.totalorder %s31, 3
          %s346 = scalar_select %p345, %s31, 3
          %s347 = smul.addr %s346, 4
          %s348 = scalar_lea.vmem %s5, %s347
        $region40: #{tpu_custom_call.1} parent=15 // pred_fallthru
          _
      $region16: #{tpu_custom_call.1} parent=5 // pred_fallthru
        _
      %p349 = scmp.le.s32.totalorder 1, %s24
      %p350 = scmp.lt.s32.totalorder %s24, 5
      %p351 = pnand %p349, %p350
      %p352 = pneg %p351
      // Predicated region
      $region41: #{tpu_custom_call.1} parent=5 // pred_check
        _
      $region42: #{tpu_custom_call.1} parent=5 // pred_check_branch
        %354 = sbr.rel (%p351) target = $region44
      $region43: #{tpu_custom_call.1} parent=5 // pred_region
        %s355 = ssub.s32 %s24, 1
        %s356 = sand.u32 %s79, 1
        %s357 = scalar_lea.sflag [#allocation3], %s356
        %s358 = sand.u32 %s79, 1
        %s359 = smul.addr %s358, 3
        %s360 = scalar_lea.vmem [#allocation2], %s359
        // Predicated region
        $region45: #{tpu_custom_call.1} parent=43 // pred_check
          %p361 = pneg %p92
        $region46: #{tpu_custom_call.1} parent=43 // pred_check_branch
          %363 = sbr.rel (%p361) target = $region48
        $region47: #{tpu_custom_call.1} parent=43 // pred_region
          %364 = dma.done %s357, 48
        $region48: #{tpu_custom_call.1} parent=43 // pred_fallthru
          _
        %s365 = sand.u32 %s29, 1
        %s366 = scalar_lea.sflag [#allocation6], %s365
        %s367 = sand.u32 %s107, 1
        %s368 = smul.addr %s367, 3
        %s369 = scalar_lea.vmem [#allocation5], %s368
        // Predicated region
        $region49: #{tpu_custom_call.1} parent=43 // pred_check
          %p370 = pneg %p120
        $region50: #{tpu_custom_call.1} parent=43 // pred_check_branch
          %372 = sbr.rel (%p370) target = $region52
        $region51: #{tpu_custom_call.1} parent=43 // pred_region
          %373 = dma.done %s366, 48
        $region52: #{tpu_custom_call.1} parent=43 // pred_fallthru
          _
        %s374 = sand.u32 %s29, 1
        %s375 = scalar_lea.sflag [#allocation6], %s374
        %s376 = sand.u32 %s133, 1
        %s377 = smul.addr %s376, 16
        %s378 = scalar_lea.vmem [#allocation7], %s377
        // Predicated region
        $region53: #{tpu_custom_call.1} parent=43 // pred_check
          %p379 = pneg %p146
        $region54: #{tpu_custom_call.1} parent=43 // pred_check_branch
          %381 = sbr.rel (%p379) target = $region56
        $region55: #{tpu_custom_call.1} parent=43 // pred_region
          %382 = dma.done %s375, 256
        $region56: #{tpu_custom_call.1} parent=43 // pred_fallthru
          _
        %s383 = sand.u32 %s159, 1
        %s384 = scalar_lea.sflag [#allocation9], %s383
        %s385 = sand.u32 %s159, 1
        %s386 = smul.addr %s385, 16
        %s387 = scalar_lea.vmem [#allocation8], %s386
        // Predicated region
        $region57: #{tpu_custom_call.1} parent=43 // pred_check
          %p388 = pneg %p172
        $region58: #{tpu_custom_call.1} parent=43 // pred_check_branch
          %390 = sbr.rel (%p388) target = $region60
        $region59: #{tpu_custom_call.1} parent=43 // pred_region
          %391 = dma.done %s384, 256
        $region60: #{tpu_custom_call.1} parent=43 // pred_fallthru
          _
        %p392 = scmp.lt.s32.totalorder %s33, 3
        %s393 = scalar_select %p392, %s33, 3
        %p394 = scmp.lt.s32.totalorder %s34, 0
        %s395 = scalar_select %p394, %s34, 0
        %s396 = smul.addr %s393, 3
        %s397 = sadd.s32 %s395, %s396
        %s398 = smul.addr %s397, 2
        %s399 = scalar_lea.vmem %s0, %s398
        %p400 = pneg %p64
        %p401 = pneg %p61
        %s402 = sand.u32 %s79, 1
        %s403 = scalar_lea.sflag [#allocation3], %s402
        %s404 = sand.u32 %s79, 1
        %s405 = smul.addr %s404, 3
        %s406 = scalar_lea.vmem [#allocation2], %s405
        %p407 = pneg %p92
        %p408 = pneg %p89
        %s409 = sand.u32 %s29, 1
        %s410 = scalar_lea.sflag [#allocation6], %s409
        %s411 = sand.u32 %s107, 1
        %s412 = smul.addr %s411, 3
        %s413 = scalar_lea.vmem [#allocation5], %s412
        %p414 = pneg %p120
        %p415 = pneg %p117
        %s416 = sand.u32 %s29, 1
        %s417 = scalar_lea.sflag [#allocation6], %s416
        %s418 = sand.u32 %s133, 1
        %s419 = smul.addr %s418, 16
        %s420 = scalar_lea.vmem [#allocation7], %s419
        %p421 = pneg %p146
        %p422 = pneg %p143
        %s423 = sand.u32 %s159, 1
        %s424 = scalar_lea.sflag [#allocation9], %s423
        %s425 = sand.u32 %s159, 1
        %s426 = smul.addr %s425, 16
        %s427 = scalar_lea.vmem [#allocation8], %s426
        %p428 = pneg %p172
        %p429 = pneg %p169
        %p430 = scmp.lt.s32.totalorder %s33, 3
        %s431 = scalar_select %p430, %s33, 3
        %s432 = smul.addr %s431, 4
        %s433 = scalar_lea.vmem %s5, %s432
        %p434 = pneg %p198
        %p435 = pneg %p195
        %p436 = pneg %p226
        %p437 = pneg %p223
        %s438 = sand.u32 %s213, 1
        %s439 = scalar_lea.sflag [#allocation4], %s438
        %s440 = sand.u32 %s213, 1
        %s441 = smul.addr %s440, 6
        %s442 = scalar_lea.vmem [#allocation10], %s441
        %p443 = scmp.lt.s32.totalorder %s33, 3
        %s444 = scalar_select %p443, %s33, 3
        %p445 = scmp.lt.s32.totalorder %s34, 0
        %s446 = scalar_select %p445, %s34, 0
        %s447 = smul.addr %s444, 3
        %s448 = sadd.s32 %s446, %s447
        %s449 = smul.addr %s448, 2
        %s450 = scalar_lea.vmem %s0, %s449
        %p451 = scmp.lt.s32.totalorder %s33, 3
        %s452 = scalar_select %p451, %s33, 3
        %s453 = smul.addr %s452, 4
        %s454 = scalar_lea.vmem %s5, %s453
        %v456 = vld [vmem:[%s450] sm:$0x3]
        %s457 = scalar_lea.vmem %s450, 2
        %v458 = vld [vmem:[%s457] sm:$0x3]
        %s459 = scalar_lea.vmem %s450, 4
        %v460 = vld [vmem:[%s459] sm:$0x3]
        %v461 = vld [vmem:[%s360] sm:$0x1]
        %s462 = scalar_lea.vmem %s360, 1 [#allocation2]
        %v463 = vld [vmem:[%s462] sm:$0x1]
        %s464 = scalar_lea.vmem %s360, 2 [#allocation2]
        %v465 = vld [vmem:[%s464] sm:$0x1]
        %v466 = vld [vmem:[%s369] sm:$0x1]
        %s467 = scalar_lea.vmem %s369, 1 [#allocation5]
        %v468 = vld [vmem:[%s467] sm:$0x1]
        %s469 = scalar_lea.vmem %s369, 2 [#allocation5]
        %v470 = vld [vmem:[%s469] sm:$0x1]
        %v471 = vld [vmem:[%s378] sm:$0xf]
        %v472 = vld [vmem:[%s378 + $0x4] sm:$0xf]
        %v473 = vld [vmem:[%s378 + $0x8] sm:$0xf]
        %v474 = vld [vmem:[%s378 + $0xc] sm:$0xf]
        %v475 = vld [vmem:[%s387] sm:$0xf]
        %v476 = vld [vmem:[%s387 + $0x4] sm:$0xf]
        %v477 = vld [vmem:[%s387 + $0x8] sm:$0xf]
        %v478 = vld [vmem:[%s387 + $0xc] sm:$0xf]
        %v479 = vld [vmem:[%s454] sm:$0xf]
        %v480 = vadd.f32 %v456, %v458
        %v481 = vadd.f32 %v480, %v460
        %v482 = vmul.f32 %v481, 0.33333334
        %v483 = vpack.c.bf16 %v482, %v482
        %v488 = vunpack.c.l.b16 %v471
        %v489 = vunpack.c.l.b16 %v472
        %v490 = vunpack.c.l.b16 %v473
        %v491 = vunpack.c.l.b16 %v474
        %v492 = vpack.c.b16 %v489, %v488
        %v493 = vpack.c.b16 %v491, %v490
        %vm496 = vcmask 261120
        %v498 = vsel %vm496, %v483, 0
        %500 = vmatprep.subr.bf16.mxu0 0
        %501 = vmatpush1.bf16.msra.mxu0 %v492
        %502 = vmatprep.subr.bf16.mxu0 0
        %503 = vmatpush1.bf16.msra.mxu0 %v493
        %504 = vmatprep.subr.bf16.mxu0 0
        %505 = vmatpush1.bf16.msra.mxu0 0
        %506 = vmatprep.subr.bf16.mxu0 0
        %507 = vmatpush1.bf16.msra.mxu0 0
        %508 = vmatprep.subr.bf16.mxu0 0
        %509 = vmatpush1.bf16.msra.mxu0 0
        %510 = vmatprep.subr.bf16.mxu0 0
        %511 = vmatpush1.bf16.msra.mxu0 0
        %512 = vmatprep.subr.bf16.mxu0 0
        %513 = vmatpush1.bf16.msra.mxu0 0
        %514 = vmatprep.subr.bf16.mxu0 0
        %515 = vmatpush1.bf16.msra.mxu0 0
        %516 = vmatprep.subr.bf16.mxu0 0
        %517 = vmatpush1.bf16.msra.mxu0 0
        %518 = vmatprep.subr.bf16.mxu0 0
        %519 = vmatpush1.bf16.msra.mxu0 0
        %520 = vmatprep.subr.bf16.mxu0 0
        %521 = vmatpush1.bf16.msra.mxu0 0
        %522 = vmatprep.subr.bf16.mxu0 0
        %523 = vmatpush1.bf16.msra.mxu0 0
        %524 = vmatprep.subr.bf16.mxu0 0
        %525 = vmatpush1.bf16.msra.mxu0 0
        %526 = vmatprep.subr.bf16.mxu0 0
        %527 = vmatpush1.bf16.msra.mxu0 0
        %528 = vmatprep.subr.bf16.mxu0 0
        %529 = vmatpush1.bf16.msra.mxu0 0
        %530 = vmatprep.subr.bf16.mxu0 0
        %531 = vmatpush1.bf16.msra.mxu0 0
        %532 = vmatprep.mubr.bf16.mxu0 0
        %533 = vmatmul.mubr.bf16.gmra.mrb[0].mxu0 %v498
        %v534 = vpop.f32.mrb[0].mxu0
        %v535 = vadd.f32 0.0, %v534
        %v536 = vpop.f32.mrb[0].mxu0
        %v537 = vpop.f32.mrb[0].mxu0
        %v538 = vpop.f32.mrb[0].mxu0
        %539 = vdwg.mxu0
        %v540 = vmul.f32 %v456, %v535
        %vm541 = vcmask 254976
        %v542 = vsel %vm541, %v540, 0.0
        %543 = vadd.xlane.f32.xlu0 %v542
        %v544 = vpop.xlane.xlu0 %543
        %v545 = vmul.f32 %v458, %v535
        %v546 = vsel %vm541, %v545, 0.0
        %547 = vadd.xlane.f32.xlu0 %v546
        %v548 = vpop.xlane.xlu0 %547
        %v549 = vmul.f32 %v460, %v535
        %v550 = vsel %vm541, %v549, 0.0
        %551 = vadd.xlane.f32.xlu0 %v550
        %v552 = vpop.xlane.xlu0 %551
        %v553 = vunpack.c.l.bf16 %v461
        %v556 = vunpack.c.l.s4 1983009808
        %v557 = vunpack.c.0.s8 %v556
        %v558 = vlaneseq
        %v559 = vshrl.u32 %v558, 7
        %v560 = vsub.s32 %v557, %v559
        %v561 = vrot.slane %v535, %v560
        %562 = vrot.lane.b32.xlu0 %v561, 96
        %v563 = vpop.permute.xlu0 %562
        %v565 = vmul.f32 %v553, %v563
        %v566 = vsel %vm541, %v565, 0.0
        %567 = vadd.xlane.f32.xlu0 %v566
        %v568 = vpop.xlane.xlu0 %567
        %v569 = vunpack.c.l.bf16 %v463
        %v570 = vmul.f32 %v569, %v563
        %v571 = vsel %vm541, %v570, 0.0
        %572 = vadd.xlane.f32.xlu0 %v571
        %v573 = vpop.xlane.xlu0 %572
        %v574 = vunpack.c.l.bf16 %v465
        %v575 = vmul.f32 %v574, %v563
        %v576 = vsel %vm541, %v575, 0.0
        %577 = vadd.xlane.f32.xlu0 %v576
        %v578 = vpop.xlane.xlu0 %577
        %v579 = vadd.f32 %v544, %v548
        %v580 = vadd.f32 %v579, %v552
        %v581 = vmul.f32 %v580, 0.33333334
        %v582 = vsub.f32 %v544, %v581
        %v583 = vsub.f32 %v548, %v581
        %v584 = vsub.f32 %v552, %v581
        %v585 = vmul.f32 %v582, %v582
        %v586 = vmul.f32 %v583, %v583
        %v587 = vadd.f32 %v585, %v586
        %v588 = vmul.f32 %v584, %v584
        %v589 = vadd.f32 %v587, %v588
        %v590 = vmul.f32 %v589, 0.33333334
        %v591 = vadd.f32 %v590, 1e-05
        %v592 = vrsqrt.pop %v591
        %v593 = vmul.f32 %v582, %v592
        %v594 = vlaneseq
        %v595 = vshrl.u32 %v594, 7
        %v596 = vsub.s32 0, %v595
        %v597 = vrot.slane %v479, %v596
        %v598 = vmul.f32 %v593, %v597
        %v599 = vlaneseq
        %v600 = vshrl.u32 %v599, 7
        %v601 = vsub.s32 1, %v600
        %v602 = vrot.slane %v479, %v601
        %v603 = vadd.f32 %v598, %v602
        %v604 = vmul.f32 %v583, %v592
        %v605 = vmul.f32 %v604, %v597
        %v606 = vadd.f32 %v605, %v602
        %v607 = vmul.f32 %v584, %v592
        %v608 = vmul.f32 %v607, %v597
        %v609 = vadd.f32 %v608, %v602
        %611 = vrot.lane.b32.xlu0 %v606, 127
        %v612 = vpop.permute.xlu0 %611
        %v614 = vmax.f32 %v603, %v612
        %616 = vrot.lane.b32.xlu0 %v609, 126
        %v617 = vpop.permute.xlu0 %616
        %v619 = vmax.f32 %v614, %v617
        %v620 = vsub.f32 %v603, %v619
        %v621 = vmul.f32 %v620, 1.442695
        %v622 = vpow.pop %v621
        %624 = vrot.lane.b32.xlu0 %v619, 1
        %v625 = vpop.permute.xlu0 %624
        %v627 = vsub.f32 %v606, %v625
        %v628 = vmul.f32 %v627, 1.442695
        %v629 = vpow.pop %v628
        %630 = vrot.lane.b32.xlu0 %v619, 2
        %v631 = vpop.permute.xlu0 %630
        %v633 = vsub.f32 %v609, %v631
        %v634 = vmul.f32 %v633, 1.442695
        %v635 = vpow.pop %v634
        %637 = vrot.lane.b32.xlu0 %v629, 127
        %v638 = vpop.permute.xlu0 %637
        %v640 = vadd.f32 %v622, %v638
        %642 = vrot.lane.b32.xlu0 %v635, 126
        %v643 = vpop.permute.xlu0 %642
        %v645 = vadd.f32 %v640, %v643
        %v646 = vrcp.pop %v645
        %v647 = vmul.f32 1.0, %v646
        %v648 = vmul.f32 %v622, %v647
        %650 = vrot.lane.b32.xlu0 %v647, 1
        %v651 = vpop.permute.xlu0 %650
        %v653 = vmul.f32 %v629, %v651
        %654 = vrot.lane.b32.xlu0 %v647, 2
        %v655 = vpop.permute.xlu0 %654
        %v657 = vmul.f32 %v635, %v655
        %v658 = vadd.f32 %v568, %v573
        %v659 = vadd.f32 %v658, %v578
        %v660 = vmul.f32 %v659, 0.33333334
        %v661 = vsub.f32 %v568, %v660
        %v662 = vsub.f32 %v573, %v660
        %v663 = vsub.f32 %v578, %v660
        %v664 = vmul.f32 %v661, %v661
        %v665 = vmul.f32 %v662, %v662
        %v666 = vadd.f32 %v664, %v665
        %v667 = vmul.f32 %v663, %v663
        %v668 = vadd.f32 %v666, %v667
        %v669 = vmul.f32 %v668, 0.33333334
        %v670 = vadd.f32 %v669, 1e-05
        %v671 = vrsqrt.pop %v670
        %v672 = vmul.f32 %v661, %v671
        %v673 = vlaneseq
        %v674 = vshrl.u32 %v673, 7
        %v675 = vsub.s32 2, %v674
        %v676 = vrot.slane %v479, %v675
        %v677 = vmul.f32 %v672, %v676
        %v678 = vlaneseq
        %v679 = vshrl.u32 %v678, 7
        %v680 = vsub.s32 3, %v679
        %v681 = vrot.slane %v479, %v680
        %v682 = vadd.f32 %v677, %v681
        %v683 = vmul.f32 %v662, %v671
        %v684 = vmul.f32 %v683, %v676
        %v685 = vadd.f32 %v684, %v681
        %v686 = vmul.f32 %v663, %v671
        %v687 = vmul.f32 %v686, %v676
        %v688 = vadd.f32 %v687, %v681
        %690 = vrot.lane.b32.xlu0 %v685, 127
        %v691 = vpop.permute.xlu0 %690
        %v693 = vmax.f32 %v682, %v691
        %695 = vrot.lane.b32.xlu0 %v688, 126
        %v696 = vpop.permute.xlu0 %695
        %v698 = vmax.f32 %v693, %v696
        %v699 = vsub.f32 %v682, %v698
        %v700 = vmul.f32 %v699, 1.442695
        %v701 = vpow.pop %v700
        %703 = vrot.lane.b32.xlu0 %v698, 1
        %v704 = vpop.permute.xlu0 %703
        %v706 = vsub.f32 %v685, %v704
        %v707 = vmul.f32 %v706, 1.442695
        %v708 = vpow.pop %v707
        %709 = vrot.lane.b32.xlu0 %v698, 2
        %v710 = vpop.permute.xlu0 %709
        %v712 = vsub.f32 %v688, %v710
        %v713 = vmul.f32 %v712, 1.442695
        %v714 = vpow.pop %v713
        %716 = vrot.lane.b32.xlu0 %v708, 127
        %v717 = vpop.permute.xlu0 %716
        %v719 = vadd.f32 %v701, %v717
        %721 = vrot.lane.b32.xlu0 %v714, 126
        %v722 = vpop.permute.xlu0 %721
        %v724 = vadd.f32 %v719, %v722
        %v725 = vrcp.pop %v724
        %v726 = vmul.f32 1.0, %v725
        %v727 = vmul.f32 %v701, %v726
        %729 = vrot.lane.b32.xlu0 %v726, 1
        %v730 = vpop.permute.xlu0 %729
        %v732 = vmul.f32 %v708, %v730
        %733 = vrot.lane.b32.xlu0 %v726, 2
        %v734 = vpop.permute.xlu0 %733
        %v736 = vmul.f32 %v714, %v734
        %v737 = vunpack.c.l.bf16 %v466
        %739 = vset.pattern.permute.xlu0 0
        %740 = vperm.xlu0 %739, %v727
        %v741 = vpop.permute.xlu0 %740
        %v743 = vmul.f32 %v741, %v737
        %v744 = vunpack.c.l.bf16 %v468
        %746 = vset.pattern.permute.xlu0 1
        %747 = vperm.xlu0 %746, %v732
        %v748 = vpop.permute.xlu0 %747
        %v750 = vmul.f32 %v748, %v744
        %v751 = vadd.f32 %v743, %v750
        %v752 = vunpack.c.l.bf16 %v470
        %754 = vset.pattern.permute.xlu0 2
        %755 = vperm.xlu0 %754, %v736
        %v756 = vpop.permute.xlu0 %755
        %v758 = vmul.f32 %v756, %v752
        %v759 = vadd.f32 %v751, %v758
        %v760 = vpack.c.bf16 %v759, %v759
        %v765 = vunpack.c.l.b16 %v475
        %v766 = vunpack.c.l.b16 %v476
        %v767 = vunpack.c.l.b16 %v477
        %v768 = vunpack.c.l.b16 %v478
        %v769 = vpack.c.b16 %v766, %v765
        %v770 = vpack.c.b16 %v768, %v767
        %v774 = vsel %vm496, %v760, 0
        %776 = vmatprep.subr.bf16.mxu0 0
        %777 = vmatpush1.bf16.msra.mxu0 %v769
        %778 = vmatprep.subr.bf16.mxu0 0
        %779 = vmatpush1.bf16.msra.mxu0 %v770
        %780 = vmatprep.subr.bf16.mxu0 0
        %781 = vmatpush1.bf16.msra.mxu0 0
        %782 = vmatprep.subr.bf16.mxu0 0
        %783 = vmatpush1.bf16.msra.mxu0 0
        %784 = vmatprep.subr.bf16.mxu0 0
        %785 = vmatpush1.bf16.msra.mxu0 0
        %786 = vmatprep.subr.bf16.mxu0 0
        %787 = vmatpush1.bf16.msra.mxu0 0
        %788 = vmatprep.subr.bf16.mxu0 0
        %789 = vmatpush1.bf16.msra.mxu0 0
        %790 = vmatprep.subr.bf16.mxu0 0
        %791 = vmatpush1.bf16.msra.mxu0 0
        %792 = vmatprep.subr.bf16.mxu0 0
        %793 = vmatpush1.bf16.msra.mxu0 0
        %794 = vmatprep.subr.bf16.mxu0 0
        %795 = vmatpush1.bf16.msra.mxu0 0
        %796 = vmatprep.subr.bf16.mxu0 0
        %797 = vmatpush1.bf16.msra.mxu0 0
        %798 = vmatprep.subr.bf16.mxu0 0
        %799 = vmatpush1.bf16.msra.mxu0 0
        %800 = vmatprep.subr.bf16.mxu0 0
        %801 = vmatpush1.bf16.msra.mxu0 0
        %802 = vmatprep.subr.bf16.mxu0 0
        %803 = vmatpush1.bf16.msra.mxu0 0
        %804 = vmatprep.subr.bf16.mxu0 0
        %805 = vmatpush1.bf16.msra.mxu0 0
        %806 = vmatprep.subr.bf16.mxu0 0
        %807 = vmatpush1.bf16.msra.mxu0 0
        %808 = vmatprep.mubr.bf16.mxu0 0
        %809 = vmatmul.mubr.bf16.gmra.mrb[0].mxu0 %v774
        %v810 = vpop.f32.mrb[0].mxu0
        %v811 = vadd.f32 0.0, %v810
        %v812 = vpop.f32.mrb[0].mxu0
        %v813 = vpop.f32.mrb[0].mxu0
        %v814 = vpop.f32.mrb[0].mxu0
        %815 = vdwg.mxu0
        %817 = vset.pattern.permute.xlu0 0
        %818 = vperm.xlu0 %817, %v648
        %v819 = vpop.permute.xlu0 %818
        %v821 = vmul.f32 %v819, %v811
        %v822 = vadd.f32 %v821, %v456
        %823 = vst.msk [vmem:[%s442] sm:$0x3] %vm541, %v822
        %825 = vset.pattern.permute.xlu0 1
        %826 = vperm.xlu0 %825, %v653
        %v827 = vpop.permute.xlu0 %826
        %v829 = vmul.f32 %v827, %v811
        %v830 = vadd.f32 %v829, %v458
        %s831 = scalar_lea.vmem %s442, 2 [#allocation10]
        %832 = vst.msk [vmem:[%s831] sm:$0x3] %vm541, %v830
        %834 = vset.pattern.permute.xlu0 2
        %835 = vperm.xlu0 %834, %v657
        %v836 = vpop.permute.xlu0 %835
        %v838 = vmul.f32 %v836, %v811
        %v839 = vadd.f32 %v838, %v460
        %s840 = scalar_lea.vmem %s442, 4 [#allocation10]
        %841 = vst.msk [vmem:[%s840] sm:$0x3] %vm541, %v839
        %s842 = sand.u32 %s213, 1
        %s843 = scalar_lea.sflag [#allocation4], %s842
        %s844 = sand.u32 %s213, 1
        %s845 = smul.addr %s844, 6
        %s846 = scalar_lea.vmem [#allocation10], %s845
        // Predicated region
        $region61: #{tpu_custom_call.1} parent=43 // pred_check
          %p847 = pneg %p223
        $region62: #{tpu_custom_call.1} parent=43 // pred_check_branch
          %849 = sbr.rel (%p847) target = $region64
        $region63: #{tpu_custom_call.1} parent=43 // pred_region
          %s851 = ssub.s32 96, 96
          %852 = vsyncadd %s843, %s851
          %s853 = smul.addr %s33, 3
          %s854 = sadd.s32 %s34, %s853
          %s855 = smul.addr %s854, 32
          %s856 = scalar_lea.hbm %s6, %s855
          %s857 = sshll.u32 %s846, 4
          %s858 = int_to_ptr.vmem [resolvable:$true] %s857
          %863 = dma.vmem_to_hbm [thread:$0]  %s858, 96, %s856, %s843, 32, 32, 2
        $region64: #{tpu_custom_call.1} parent=43 // pred_fallthru
          _
      $region44: #{tpu_custom_call.1} parent=5 // pred_fallthru
        _
      %p864 = scmp.le.s32.totalorder 2, %s24
      // Predicated region
      $region65: #{tpu_custom_call.1} parent=5 // pred_check
        %p865 = pneg %p864
      $region66: #{tpu_custom_call.1} parent=5 // pred_check_branch
        %867 = sbr.rel (%p865) target = $region68
      $region67: #{tpu_custom_call.1} parent=5 // pred_region
        %s868 = ssub.s32 %s24, 2
        // Predicated region
        $region69: #{tpu_custom_call.1} parent=67 // pred_check
          %p869 = pneg %p229
        $region70: #{tpu_custom_call.1} parent=67 // pred_check_branch
          %871 = sbr.rel (%p869) target = $region72
        $region71: #{tpu_custom_call.1} parent=67 // pred_region
          %s872 = sand.u32 %s214, 1
          %s873 = scalar_lea.sflag [#allocation4], %s872
          %s874 = sand.u32 %s214, 1
          %s875 = smul.addr %s874, 6
          %s876 = scalar_lea.vmem [#allocation10], %s875
          %877 = dma.done %s873, 96
        $region72: #{tpu_custom_call.1} parent=67 // pred_fallthru
          _
      $region68: #{tpu_custom_call.1} parent=5 // pred_fallthru
        _
    $region6: #{tpu_custom_call.1} parent=1 // loop_footer
      %s28 = sadd.s32 1, %s24
    $region7: #{tpu_custom_call.1} parent=1 // loop_footer_branch
      %23 = sbr.rel target = $region3
    $region8: #{tpu_custom_call.1} parent=1 // loop_exit
      _
    %878 = vsyncpa [#allocation3], 1
    %s879 = scalar_lea.sflag [#allocation3], 1
    %880 = vsyncpa %s879, 1
    %881 = vsyncpa [#allocation6], 1
    %s882 = scalar_lea.sflag [#allocation6], 1
    %883 = vsyncpa %s882, 1
    %884 = vsyncpa [#allocation9], 1
    %s885 = scalar_lea.sflag [#allocation9], 1
    %886 = vsyncpa %s885, 1
    %887 = vsyncpa [#allocation4], 1
    %s888 = scalar_lea.sflag [#allocation4], 1
    %889 = vsyncpa %s888, 1

</llo_original>
